<compile_context>
chip_gen: v5e
topology: v5e:2x2
jax: 0.10.0
libtpu: 0.0.40
codegen_flags: <defaults>
</compile_context>

<pallas_src>
import functools

import jax
import jax.numpy as jnp
import numpy as np
from jax.experimental import pallas as pl
from jax.experimental.pallas import tpu as pltpu

_LOG_2PI = float(np.log(2.0 * np.pi))

_TARGET_TILE_BYTES = 2 << 20    # ~2 MiB of real data per input stream per step
_VMEM_INPUT_BUDGET = 24 << 20   # all double-buffered input tiles together
_VMEM_LIMIT_BYTES = 32 << 20    # scoped-VMEM limit (safe on v5e/v6e/v7x)


def _make_kernel(has_means, has_logs, *, d_total, td, nd, p, need_mask):
    """Build a kernel specialized on which parameter streams exist."""

    def kernel(*refs):
        x_ref = refs[0]
        pos = 1
        m_ref = None
        l_ref = None
        if has_means:
            m_ref = refs[pos]
            pos += 1
        if has_logs:
            l_ref = refs[pos]
            pos += 1
        o_ref = refs[pos]

        pp = pl.program_id(1)   # parallel reduction-partition axis
        i = pl.program_id(2)    # "arbitrary" reduction axis (innermost)

        @pl.when(i == 0)
        def _():
            o_ref[...] = jnp.zeros_like(o_ref)

        x = x_ref[...].astype(jnp.float32)
        diff = x - m_ref[...].astype(jnp.float32) if has_means else x
        sq = diff * diff
        if has_logs:
            l = l_ref[...].astype(jnp.float32)
            # exp lowers to the EUP (its own bundle slot — hidden under the
            # memory-bound roofline on v5e/v6e; see notes for v7x).
            term = sq * jnp.exp(-2.0 * l) + 2.0 * l
        else:
            term = sq

        def accumulate(t):
            o_ref[...] += jnp.sum(t, axis=-1, keepdims=True)

        if need_mask:
            # Only the very last reduction block is ragged; every other grid
            # step stays mask-free (no iota/compare/select on the hot path).
            is_last = jnp.logical_and(pp == p - 1, i == nd - 1)

            @pl.when(is_last)
            def _():
                g = pp * nd + i
                col = jax.lax.broadcasted_iota(jnp.int32, term.shape, 1) + g * td
                # where() selects (does not multiply) -> OOB garbage/NaN in the
                # padded tail cannot propagate into the sum.
                accumulate(jnp.where(col < d_total, term, 0.0))

            @pl.when(jnp.logical_not(is_last))
            def _():
                accumulate(term)
        else:
            accumulate(term)

    return kernel


def _ceil_to(v, m):
    return -(-v // m) * m


def _pick_tb(n):
    """Batch tile: whole (small) batch, or the largest multiple-of-8 divisor."""
    if n <= 8:
        return n
    best = None
    for cand in range(8, min(n, 512) + 1, 8):
        if n % cand == 0:
            best = cand
    return best if best is not None else n


def _choose_layout(n, d, itemsize, n_streams):
    tb = _pick_tb(n)
    nb = n // tb  # exact: tb divides n (or tb == n)

    # Reduction-axis tile sized from the *actual* bytes moved per grid step
    # (real row count tb and the input dtype's itemsize), lane-dense (x128).
    td = max(128, (_TARGET_TILE_BYTES // (tb * itemsize)) // 128 * 128)
    if td >= d:
        td = d  # block == full dim is legal

    # Keep every double-buffered input stream inside the scoped-VMEM budget.
    while n_streams * 2 * tb * td * itemsize > _VMEM_INPUT_BUDGET and td > 128:
        td = max(128, (td // 2) // 128 * 128)

    nd_total = pl.cdiv(d, td)

    # Megacore (v7x): if the batch axis has only one block, split the
    # reduction blocks into two parallel partitions (disjoint output columns)
    # so both TensorCores get independent streams. No-op on v5e/v6e.
    p = 1
    if nb == 1 and nd_total % 2 == 1 and d > 128:
        td2 = _ceil_to(pl.cdiv(d, nd_total + 1), 128)
        if td2 < d:
            nd2 = pl.cdiv(d, td2)
            if nd2 % 2 == 0:
                td, nd_total = td2, nd2
    if nb == 1 and nd_total >= 2 and nd_total % 2 == 0:
        p = 2
    nd = nd_total // p

    need_mask = (d % td) != 0
    return tb, nb, td, nd, p, need_mask


def _gaussian_diag_logp_2d(x2d, m2d, l2d):
    n, d = x2d.shape
    has_means = m2d is not None
    has_logs = l2d is not None
    n_streams = 1 + int(has_means) + int(has_logs)
    itemsize = jnp.dtype(x2d.dtype).itemsize

    tb, nb, td, nd, p, need_mask = _choose_layout(n, d, itemsize, n_streams)

    in_block = pl.BlockSpec((tb, td), lambda b, pp, i: (b, pp * nd + i))
    # Output (p, n, 1): each parallel partition owns its own column block
    # (no cross-core races); leading dim squeezed out of the kernel ref.
    out_block = pl.BlockSpec((None, tb, 1), lambda b, pp, i: (pp, b, 0))

    kernel = _make_kernel(has_means, has_logs, d_total=d, td=td, nd=nd, p=p,
                          need_mask=need_mask)

    args = [x2d]
    in_specs = [in_block]
    if has_means:
        args.append(m2d)
        in_specs.append(in_block)
    if has_logs:
        args.append(l2d)
        in_specs.append(in_block)

    flops_per_elem = 2 + (1 if has_means else 0) + (3 if has_logs else 0)

    out = pl.pallas_call(
        kernel,
        out_shape=jax.ShapeDtypeStruct((p, n, 1), jnp.float32),
        grid_spec=pltpu.PrefetchScalarGridSpec(
            num_scalar_prefetch=0,
            grid=(nb, p, nd),
            in_specs=in_specs,
            out_specs=out_block,
        ),
        compiler_params=pltpu.CompilerParams(
            dimension_semantics=("parallel", "parallel", "arbitrary"),
            vmem_limit_bytes=_VMEM_LIMIT_BYTES),
        cost_estimate=pl.CostEstimate(
            flops=flops_per_elem * x2d.size,
            transcendentals=(x2d.size if has_logs else 0),
            bytes_accessed=n_streams * x2d.size * itemsize + p * n * 4),
    )(*args)

    # Finalize in the wrapper: sum the parallel partitions and fold the
    # constant D*log(2*pi) and the -0.5 once per batch row (hoisted off the
    # per-element hot path).
    partial = out[:, :, 0].sum(axis=0)
    return -0.5 * (partial + d * _LOG_2PI)


@jax.jit
def gaussian_diag_logp(x, means=None, logs=None):
    """Pallas equivalent of GaussianDiagLogp.forward. Returns shape (N,)."""
    n = x.shape[0]
    d = int(np.prod(x.shape[1:]))
    x2d = x.reshape(n, d)
    m2d = None
    l2d = None
    if means is not None:
        # TODO(synk): when means/logs are small broadcastable parameters
        # (e.g. per-channel (1,C,1,1)), feed them un-broadcast via a
        # replicated BlockSpec instead of expanding to a full (N, D) stream.
        m2d = jnp.broadcast_to(means, x.shape).reshape(n, d)
    if logs is not None:
        l2d = jnp.broadcast_to(logs, x.shape).reshape(n, d)
    return _gaussian_diag_logp_2d(x2d, m2d, l2d)


if __name__ == "__main__":
    key = jax.random.PRNGKey(0)
    k_x, k_m, k_l = jax.random.split(key, 3)

    batch, channels, height, width = 2, 4, 16, 16
    x = jax.random.normal(k_x, (batch, channels, height, width), jnp.float32)
    means = 0.1 * jax.random.normal(k_m, x.shape, jnp.float32)
    logs = 0.1 * jax.random.normal(k_l, x.shape, jnp.float32)

    # Plain-JAX reference (mirrors the PyTorch forward).
    def ref(x, means=None, logs=None):
        if means is None:
            means = jnp.zeros_like(x)
        if logs is None:
            logs = jnp.zeros_like(x)
        t = -0.5 * ((x - means) ** 2 / jnp.exp(2.0 * logs)
                    + jnp.log(2.0 * jnp.pi) + 2.0 * logs)
        return t.reshape(x.shape[0], -1).sum(-1)

    ok = True
    for args in [(x,), (x, means, None), (x, None, logs), (x, means, logs)]:
        got = gaussian_diag_logp(*args)
        jax.block_until_ready(got)
        want = ref(*args)
        ok &= got.shape == (batch,)
        ok &= bool(jnp.allclose(got, want, rtol=1e-4, atol=1e-2))
    assert ok

    print("KERNEL_OK")
</pallas_src>

<mosaic_0001>
module attributes {stable_mosaic.version = 11 : i64} {
  func.func @kernel(%arg0: i32, %arg1: i32, %arg2: i32, %arg3: memref<2x512xf32, #tpu.memory_space<vmem>>, %arg4: memref<1x2x1xf32, #tpu.memory_space<vmem>>) attributes {dimension_semantics = [#tpu.dimension_semantics<parallel>, #tpu.dimension_semantics<parallel>, #tpu.dimension_semantics<arbitrary>], iteration_bounds = array<i64: 1, 2, 1>, scalar_prefetch = 0 : i64, scratch_operands = 0 : i64, tpu.core_type = #tpu.core_type<tc>, window_params = [{transform_indices = @transform_0, window_bounds = array<i64: 2, 512>}, {transform_indices = @transform_1, window_bounds = array<i64: 1, 2, 1>}]} {
    %c0_i32 = arith.constant 0 : i32
    %0 = arith.cmpi eq, %arg2, %c0_i32 : i32
    %1 = arith.extui %0 : i1 to i32
    %c0_i32_0 = arith.constant 0 : i32
    %2 = arith.cmpi ne, %1, %c0_i32_0 : i32
    scf.if %2 {
      %cst_8 = arith.constant 0.000000e+00 : f32
      %13 = vector.broadcast %cst_8 : f32 to vector<2x1xf32>
      %c0_9 = arith.constant 0 : index
      %c0_10 = arith.constant 0 : index
      %c0_11 = arith.constant 0 : index
      %14 = vector.load %arg4[%c0_9, %c0_10, %c0_11] : memref<1x2x1xf32, #tpu.memory_space<vmem>>, vector<1x2x1xf32>
      %15 = vector.shape_cast %14 : vector<1x2x1xf32> to vector<2x1xf32>
      %16 = vector.shape_cast %13 : vector<2x1xf32> to vector<1x2x1xf32>
      tpu.vector_store %arg4[%c0_9, %c0_10, %c0_11], %16 {strides = array<i32>} : memref<1x2x1xf32, #tpu.memory_space<vmem>>, vector<1x2x1xf32>,
    } else {
    }
    %c0 = arith.constant 0 : index
    %c0_1 = arith.constant 0 : index
    %3 = vector.load %arg3[%c0, %c0_1] : memref<2x512xf32, #tpu.memory_space<vmem>>, vector<2x512xf32>
    %4 = arith.mulf %3, %3 : vector<2x512xf32>
    %c0_2 = arith.constant 0 : index
    %c0_3 = arith.constant 0 : index
    %c0_4 = arith.constant 0 : index
    %5 = vector.load %arg4[%c0_2, %c0_3, %c0_4] : memref<1x2x1xf32, #tpu.memory_space<vmem>>, vector<1x2x1xf32>
    %6 = vector.shape_cast %5 : vector<1x2x1xf32> to vector<2x1xf32>
    %cst = arith.constant dense<0.000000e+00> : vector<2xf32>
    %7 = vector.multi_reduction <add>, %4, %cst [1] : vector<2x512xf32> to vector<2xf32>
    %8 = vector.shape_cast %7 : vector<2xf32> to vector<2x1xf32>
    %9 = arith.addf %6, %8 : vector<2x1xf32>
    %c0_5 = arith.constant 0 : index
    %c0_6 = arith.constant 0 : index
    %c0_7 = arith.constant 0 : index
    %10 = vector.load %arg4[%c0_5, %c0_6, %c0_7] : memref<1x2x1xf32, #tpu.memory_space<vmem>>, vector<1x2x1xf32>
    %11 = vector.shape_cast %10 : vector<1x2x1xf32> to vector<2x1xf32>
    %12 = vector.shape_cast %9 : vector<2x1xf32> to vector<1x2x1xf32>
    tpu.vector_store %arg4[%c0_5, %c0_6, %c0_7], %12 {strides = array<i32>} : memref<1x2x1xf32, #tpu.memory_space<vmem>>, vector<1x2x1xf32>,
    return
  }
  func.func @transform_0(%arg0: i32, %arg1: i32, %arg2: i32) -> (i32, i32) {
    %c1_i32 = arith.constant 1 : i32
    %0 = arith.muli %arg1, %c1_i32 : i32
    %1 = arith.addi %0, %arg2 : i32
    %c0_i32 = arith.constant 0 : i32
    return %arg0, %1 : i32, i32
  }
  func.func @transform_1(%arg0: i32, %arg1: i32, %arg2: i32) -> (i32, i32, i32) {
    %c0_i32 = arith.constant 0 : i32
    %c0_i32_0 = arith.constant 0 : i32
    return %arg1, %arg0, %c0_i32 : i32, i32, i32
  }
}

</mosaic_0001>

<llo_original>
// kernel: gaussian_diag_logp.1
$region0: #{gaussian_diag_logp.1}
  #allocation0 [shape = 'u32[]', space=smem, size = 0x4, offset = 0x4, fixed_abs, tag = 'smem constant byte address 0x4 - core index']
  #allocation1 [shape = 'u32[72,128]{1,0:T(1,128)}', space=vmem, size = 0x9000, scoped, tag = 'internal scratch']
  %s0 = inlined_call_operand.vmem [shape: f32[2,1024], index: 0, kind: input, shape index: {}]
  %s1 = inlined_call_operand.vmem [shape: f32[2,2,1], index: 1, kind: output, shape index: {}]
  %s2 = sld [smem:[#allocation0]]
  $region41: #{gaussian_diag_logp.1} parent=0
    _
  %s4 = ssub.s32 1, %s2
  %s5 = scalar_select 0, %s4, %s2
  loop: start=0, step=1, limit=4
  $region2: #{gaussian_diag_logp.1} parent=0 // loop_pre_header
    _
  $region3: #{gaussian_diag_logp.1} parent=0 // loop_header
    %s7 = sphi 0, %s11
    %p8 = scmp.ge.s32.totalorder %s7, 4
    %s14 = sphi 0, %s33
    %s15 = sphi 0, %s29
    %s16 = sphi 0, %s25
    %s17 = sphi 0, %s14
    %s18 = sphi 0, %s15
    %s19 = sphi 0, %s16
    %s20 = sphi 0, %s17
    %s21 = sphi 0, %s18
    %s22 = sphi 0, %s19
    %s40 = sphi 0, %s42
    %s43 = sphi 0, %s40
    %s44 = sphi 0, %s43
    %s60 = sphi 0, %s44
    %s68 = sphi 0, %s70
    %s71 = sphi 0, %s68
    %s72 = sphi 0, %s71
    %s88 = sphi 0, %s72
  $region4: #{gaussian_diag_logp.1} parent=0 // loop_header_branch
    %10 = sbr.rel (%p8) target = $region8
  $region5: #{gaussian_diag_logp.1} parent=0 // loop_body
    %s12 = ssub.s32 %s7, 1
    %s13 = ssub.s32 %s7, 2
    %s23 = sadd.s32 1, %s16
    %p24 = scmp.ge.s32.totalorder %s23, 1
    %s25 = scalar_select %p24, 0, %s23
    %s26 = sadd.s32 1, %s15
    %s27 = scalar_select %p24, %s26, %s15
    %p28 = scmp.ge.s32.totalorder %s27, 2
    %s29 = scalar_select %p28, 0, %s27
    %s30 = sadd.s32 1, %s14
    %s31 = scalar_select %p28, %s30, %s14
    %p32 = scmp.ge.s32.totalorder %s31, 1
    %s33 = scalar_select %p32, 0, %s31
    %s34 = sadd.s32 %s15, %s16
    %s35 = sadd.s32 %s29, %s25
    %s36 = ssub.s32 %s14, %s33
    %s37 = ssub.s32 %s34, %s35
    %s38 = sor.u32 %s36, %s37
    %p39 = scmp.eq.s32.totalorder %s38, 0
    %s41 = sadd.s32 %s40, 1
    %s42 = scalar_select %p39, %s40, %s41
    %p45 = pneg %p39
    %p46 = scmp.eq.s32.totalorder %s7, 1
    %p47 = por %p45, %p46
    %p48 = scmp.ne.s32.totalorder %s40, %s43
    %p49 = scmp.eq.s32.totalorder %s7, 0
    %p50 = por %p48, %p49
    %p51 = scmp.ne.s32.totalorder %s40, %s43
    %p52 = scmp.eq.s32.totalorder %s12, 1
    %p53 = por %p51, %p52
    %p54 = scmp.ne.s32.totalorder %s43, %s44
    %p55 = scmp.eq.s32.totalorder %s12, 0
    %p56 = por %p54, %p55
    %p57 = scmp.ne.s32.totalorder %s43, %s44
    %p58 = scmp.eq.s32.totalorder %s13, 1
    %p59 = por %p57, %p58
    %p61 = scmp.ne.s32.totalorder %s44, %s60
    %p62 = scmp.eq.s32.totalorder %s13, 0
    %p63 = por %p61, %p62
    %s64 = ssub.s32 %s15, %s29
    %s65 = ssub.s32 %s14, %s33
    %s66 = sor.u32 %s64, %s65
    %p67 = scmp.eq.s32.totalorder %s66, 0
    %s69 = sadd.s32 %s68, 1
    %s70 = scalar_select %p67, %s68, %s69
    %p73 = pneg %p67
    %p74 = scmp.eq.s32.totalorder %s7, 1
    %p75 = por %p73, %p74
    %p76 = scmp.ne.s32.totalorder %s68, %s71
    %p77 = scmp.eq.s32.totalorder %s7, 0
    %p78 = por %p76, %p77
    %p79 = scmp.ne.s32.totalorder %s68, %s71
    %p80 = scmp.eq.s32.totalorder %s12, 1
    %p81 = por %p79, %p80
    %p82 = scmp.ne.s32.totalorder %s71, %s72
    %p83 = scmp.eq.s32.totalorder %s12, 0
    %p84 = por %p82, %p83
    %p85 = scmp.ne.s32.totalorder %s71, %s72
    %p86 = scmp.eq.s32.totalorder %s13, 1
    %p87 = por %p85, %p86
    %p89 = scmp.ne.s32.totalorder %s72, %s88
    %p90 = scmp.eq.s32.totalorder %s13, 0
    %p91 = por %p89, %p90
    %p92 = scmp.le.s32.totalorder 1, %s7
    %p93 = scmp.lt.s32.totalorder %s7, 3
    %p94 = pnand %p92, %p93
    %p95 = pneg %p94
    // Predicated region
    $region9: #{gaussian_diag_logp.1} parent=5 // pred_check
      _
    $region10: #{gaussian_diag_logp.1} parent=5 // pred_check_branch
      %97 = sbr.rel (%p94) target = $region12
    $region11: #{gaussian_diag_logp.1} parent=5 // pred_region
      %s98 = ssub.s32 %s7, 1
    $region12: #{gaussian_diag_logp.1} parent=5 // pred_fallthru
      _
    %p99 = scmp.lt.s32.totalorder %s7, 2
    // Predicated region
    $region13: #{gaussian_diag_logp.1} parent=5 // pred_check
      %p100 = pneg %p99
    $region14: #{gaussian_diag_logp.1} parent=5 // pred_check_branch
      %102 = sbr.rel (%p100) target = $region16
    $region15: #{gaussian_diag_logp.1} parent=5 // pred_region
      // Predicated region
      $region17: #{gaussian_diag_logp.1} parent=15 // pred_check
        %p103 = pneg %p50
      $region18: #{gaussian_diag_logp.1} parent=15 // pred_check_branch
        %105 = sbr.rel (%p103) target = $region20
      $region19: #{gaussian_diag_logp.1} parent=15 // pred_region
        %s106 = sadd.s32 %s15, %s16
        %s107 = smul.u32 4, %s106
        %p108 = scmp.lt.s32.totalorder %s14, 0
        %s109 = scalar_select %p108, %s14, 0
        %p110 = scmp.lt.s32.totalorder %s107, 7
        %s111 = scalar_select %p110, %s107, 7
        %s112 = smul.addr %s109, 8
        %s113 = sadd.s32 %s111, %s112
        %s114 = smul.addr %s113, 2
        %s115 = scalar_lea.vmem %s0, %s114
        %s116 = sadd.s32 %s15, %s16
        %s117 = smul.u32 4, %s116
      $region20: #{gaussian_diag_logp.1} parent=15 // pred_fallthru
        _
    $region16: #{gaussian_diag_logp.1} parent=5 // pred_fallthru
      _
    %p118 = scmp.le.s32.totalorder 1, %s7
    %p119 = scmp.lt.s32.totalorder %s7, 3
    %p120 = pnand %p118, %p119
    %p121 = pneg %p120
    // Predicated region
    $region21: #{gaussian_diag_logp.1} parent=5 // pred_check
      _
    $region22: #{gaussian_diag_logp.1} parent=5 // pred_check_branch
      %123 = sbr.rel (%p120) target = $region24
    $region23: #{gaussian_diag_logp.1} parent=5 // pred_region
      %s124 = ssub.s32 %s7, 1
      %s125 = sadd.s32 %s18, %s19
      %s126 = smul.u32 4, %s125
      %p127 = scmp.lt.s32.totalorder %s17, 0
      %s128 = scalar_select %p127, %s17, 0
      %p129 = scmp.lt.s32.totalorder %s126, 7
      %s130 = scalar_select %p129, %s126, 7
      %s131 = smul.addr %s128, 8
      %s132 = sadd.s32 %s130, %s131
      %s133 = smul.addr %s132, 2
      %s134 = scalar_lea.vmem %s0, %s133
      %p135 = pneg %p56
      %p136 = pneg %p53
      %p137 = pneg %p84
      %p138 = pneg %p81
      %p139 = scmp.lt.s32.totalorder %s18, 1
      %s140 = scalar_select %p139, %s18, 1
      %p141 = scmp.lt.s32.totalorder %s17, 0
      %s142 = scalar_select %p141, %s17, 0
      %s143 = sadd.s32 %s142, %s140
      %s144 = smul.addr %s143, 2
      %s145 = scalar_lea.vmem %s1, %s144
      %s146 = sadd.s32 %s18, %s19
      %s147 = smul.u32 4, %s146
      %p148 = scmp.lt.s32.totalorder %s17, 0
      %s149 = scalar_select %p148, %s17, 0
      %p150 = scmp.lt.s32.totalorder %s147, 7
      %s151 = scalar_select %p150, %s147, 7
      %s152 = smul.addr %s149, 8
      %s153 = sadd.s32 %s151, %s152
      %s154 = smul.addr %s153, 2
      %s155 = scalar_lea.vmem %s0, %s154
      %s156 = sadd.s32 %s18, %s19
      %s157 = smul.u32 4, %s156
      %p158 = scmp.lt.s32.totalorder %s18, 1
      %s159 = scalar_select %p158, %s18, 1
      %p160 = scmp.lt.s32.totalorder %s17, 0
      %s161 = scalar_select %p160, %s17, 0
      %s162 = sadd.s32 %s161, %s159
      %s163 = smul.addr %s162, 2
      %s164 = scalar_lea.vmem %s1, %s163
      %p165 = scmp.eq.s32.totalorder %s19, 0
      // Predicated region
      $region25: #{gaussian_diag_logp.1} parent=23 // pred_check
        %p166 = pneg %p165
      $region26: #{gaussian_diag_logp.1} parent=23 // pred_check_branch
        %168 = sbr.rel (%p166) target = $region28
      $region27: #{gaussian_diag_logp.1} parent=23 // pred_region
        %vm169 = vcmask 1024
        %170 = vst.msk [vmem:[%s164] sm:$0x3] %vm169, 0.0
      $region28: #{gaussian_diag_logp.1} parent=23 // pred_fallthru
        _
      %v171 = vld [vmem:[%s155] sm:$0xff]
      %v172 = vmul.f32 %v171, %v171
      %v173 = vld [vmem:[%s164] sm:$0x3]
      %175 = vst [vmem:[#allocation1] ss:$4 sm:$0xff] %v172
      %v176 = vld.sshfl [vmem:[#allocation1] sm:$0xff pattern:$0x73625140]
      %v177 = vld.sshfl [vmem:[#allocation1 + $0x8] sm:$0xff pattern:$0x73625140]
      %v178 = vld.sshfl [vmem:[#allocation1 + $0x10] sm:$0xff pattern:$0x73625140]
      %v179 = vld.sshfl [vmem:[#allocation1 + $0x18] sm:$0xff pattern:$0x73625140]
      %vm184 = vcmask 1041408
      %v185 = vsel %vm184, %v176, 0.0
      %v186 = vsel %vm184, %v177, 0.0
      %v187 = vadd.f32 %v185, %v186
      %v188 = vsel %vm184, %v178, 0.0
      %v189 = vadd.f32 %v187, %v188
      %v190 = vsel %vm184, %v179, 0.0
      %v191 = vadd.f32 %v189, %v190
      %192 = vadd.xlane.f32.xlu0 %v191
      %v193 = vpop.xlane.xlu0 %192
      %v194 = vadd.f32 %v173, %v193
      %vm195 = vcmask 1024
      %196 = vst.msk [vmem:[%s164] sm:$0x3] %vm195, %v194
      %p197 = scmp.lt.s32.totalorder %s18, 1
      %s198 = scalar_select %p197, %s18, 1
      %p199 = scmp.lt.s32.totalorder %s17, 0
      %s200 = scalar_select %p199, %s17, 0
      %s201 = sadd.s32 %s200, %s198
      %s202 = smul.addr %s201, 2
      %s203 = scalar_lea.vmem %s1, %s202
      // Predicated region
      $region29: #{gaussian_diag_logp.1} parent=23 // pred_check
        %p204 = pneg %p81
      $region30: #{gaussian_diag_logp.1} parent=23 // pred_check_branch
        %206 = sbr.rel (%p204) target = $region32
      $region31: #{gaussian_diag_logp.1} parent=23 // pred_region
        _
      $region32: #{gaussian_diag_logp.1} parent=23 // pred_fallthru
        _
    $region24: #{gaussian_diag_logp.1} parent=5 // pred_fallthru
      _
    %p207 = scmp.le.s32.totalorder 2, %s7
    // Predicated region
    $region33: #{gaussian_diag_logp.1} parent=5 // pred_check
      %p208 = pneg %p207
    $region34: #{gaussian_diag_logp.1} parent=5 // pred_check_branch
      %210 = sbr.rel (%p208) target = $region36
    $region35: #{gaussian_diag_logp.1} parent=5 // pred_region
      %s211 = ssub.s32 %s7, 2
      // Predicated region
      $region37: #{gaussian_diag_logp.1} parent=35 // pred_check
        %p212 = pneg %p87
      $region38: #{gaussian_diag_logp.1} parent=35 // pred_check_branch
        %214 = sbr.rel (%p212) target = $region40
      $region39: #{gaussian_diag_logp.1} parent=35 // pred_region
        %p215 = scmp.lt.s32.totalorder %s21, 1
        %s216 = scalar_select %p215, %s21, 1
        %p217 = scmp.lt.s32.totalorder %s20, 0
        %s218 = scalar_select %p217, %s20, 0
        %s219 = sadd.s32 %s218, %s216
        %s220 = smul.addr %s219, 2
        %s221 = scalar_lea.vmem %s1, %s220
      $region40: #{gaussian_diag_logp.1} parent=35 // pred_fallthru
        _
    $region36: #{gaussian_diag_logp.1} parent=5 // pred_fallthru
      _
  $region6: #{gaussian_diag_logp.1} parent=0 // loop_footer
    %s11 = sadd.s32 1, %s7
  $region7: #{gaussian_diag_logp.1} parent=0 // loop_footer_branch
    %6 = sbr.rel target = $region3
  $region8: #{gaussian_diag_logp.1} parent=0 // loop_exit
    _

</llo_original>
